<compile_context>
chip_gen: v6e
topology: v6e:2x2x1
jax: 0.10.0
libtpu: 0.0.40
codegen_flags: <defaults>
</compile_context>

<pallas_src>
import jax
import jax.numpy as jnp
from jax.experimental import pallas as pl
from jax.experimental.pallas import tpu as pltpu


def _round_up(v, m):
    return ((v + m - 1) // m) * m


# ----------------------------------------------------------------------------
# Kernels
# ----------------------------------------------------------------------------
def _product_kernel_resident_w(x_ref, w_ref, b_ref, o_ref):
    # Fused weight matrix is fully resident in VMEM: one MXU matmul per batch
    # tile, bias added once, store already in the output dtype (lane-dense).
    acc = jnp.dot(x_ref[...], w_ref[...], preferred_element_type=jnp.float32)
    o_ref[...] = (acc + b_ref[...]).astype(o_ref.dtype)


def _product_kernel_ktiled(x_ref, w_ref, b_ref, o_ref, acc_ref):
    # Fallback when the fused weights do not fit VMEM: K-tiled reduction with
    # an f32 scratch accumulator, finalized in the output dtype on last step.
    k = pl.program_id(1)

    @pl.when(k == 0)
    def _():
        acc_ref[...] = jnp.broadcast_to(b_ref[...], acc_ref.shape)

    acc_ref[...] += jnp.dot(
        x_ref[...], w_ref[...], preferred_element_type=jnp.float32
    )

    @pl.when(k == pl.num_programs(1) - 1)
    def _():
        o_ref[...] = acc_ref[...].astype(o_ref.dtype)


# ----------------------------------------------------------------------------
# One-time parameter fusion (static weights -> do NOT rerun per forward)
# ----------------------------------------------------------------------------
def prepare_product_params(weights, biases, *, compute_dtype=None):
    """Fuse M Linear(n_sub, D) heads into a padded (N, d_pad) weight and a
    summed (1, d_pad) bias.  Call once; reuse the result for every forward."""
    M, n_sub, D = weights.shape
    N = M * n_sub
    d_pad = _round_up(max(D, 128), 128)  # lane-dense output (unmasked vst)

    w_full = weights.reshape(N, D)                            # block-row concat
    b_sum = biases.reshape(M, D).sum(axis=0, keepdims=True)   # sum_k b_k
    if d_pad != D:
        w_full = jnp.pad(w_full, ((0, 0), (0, d_pad - D)))
        b_sum = jnp.pad(b_sum, ((0, 0), (0, d_pad - D)))
    if compute_dtype is not None:
        w_full = w_full.astype(compute_dtype)
    return w_full, b_sum.astype(jnp.float32), D


# ----------------------------------------------------------------------------
# Forward
# ----------------------------------------------------------------------------
_VMEM_TILE_BUDGET = 24 << 20   # live-tile budget (safe on v7x's 64 MiB VMEM)
_VMEM_LIMIT = 32 << 20         # scoped VMEM limit handed to Mosaic
_RESIDENT_W_MAX = 12 << 20     # double-buffered fused-W budget for K-free path
_TB_CAP = 1024                 # max batch tile
_TK_CAP = 2048                 # max reduction tile (fallback path)


def product_forward(x, w_full, b_sum, D, *, compute_dtype=None):
    """Product.forward: sum_k Linear_k(x[:, k*n_sub:(k+1)*n_sub]) -> (B, D)."""
    B, N = x.shape
    n_w, d_pad = w_full.shape
    assert N == n_w, "feature dim must equal sum of sub-model widths"
    out_dtype = x.dtype

    if compute_dtype is not None:
        x = x.astype(compute_dtype)
        w_full = w_full.astype(compute_dtype)

    x_item = jnp.dtype(x.dtype).itemsize
    w_item = jnp.dtype(w_full.dtype).itemsize
    o_item = jnp.dtype(out_dtype).itemsize
    w_bytes = N * d_pad * w_item

    if 2 * w_bytes <= _RESIDENT_W_MAX:
        # ---------------- K-free path: fused W fully resident in VMEM -------
        # VMEM: 2*tb*N (x, dbl-buf) + 2*w_bytes (W) + 2*tb*d_pad (out, dbl-buf)
        per_row = 2 * N * x_item + 2 * d_pad * o_item
        avail = _VMEM_TILE_BUDGET - 2 * w_bytes - 2 * d_pad * 4
        tb = max(8, min(_TB_CAP, (avail // per_row) // 8 * 8, _round_up(B, 8)))
        # v7x: keep >=2 batch tiles so the "parallel" axis shards across both
        # TensorCores (harmless on single-TC v5e/v6e).
        if B >= 16 and _round_up(B, tb) // tb < 2:
            tb = max(8, _round_up((B + 1) // 2, 8))
        b_pad = _round_up(B, tb)
        if b_pad != B:
            x = jnp.pad(x, ((0, b_pad - B), (0, 0)))  # zero rows -> sliced off

        cost = pl.CostEstimate(
            flops=2 * b_pad * N * d_pad,
            transcendentals=0,
            bytes_accessed=b_pad * N * x_item + w_bytes + b_pad * d_pad * o_item,
        )
        out = pl.pallas_call(
            _product_kernel_resident_w,
            out_shape=jax.ShapeDtypeStruct((b_pad, d_pad), out_dtype),
            grid_spec=pltpu.PrefetchScalarGridSpec(
                num_scalar_prefetch=0,
                grid=(b_pad // tb,),
                in_specs=[
                    pl.BlockSpec((tb, N), lambda i: (i, 0)),       # x rows
                    pl.BlockSpec((N, d_pad), lambda i: (0, 0)),    # fused W
                    pl.BlockSpec((1, d_pad), lambda i: (0, 0)),    # summed bias
                ],
                out_specs=pl.BlockSpec((tb, d_pad), lambda i: (i, 0)),
            ),
            compiler_params=pltpu.CompilerParams(
                dimension_semantics=("parallel",),
                vmem_limit_bytes=_VMEM_LIMIT,
            ),
            cost_estimate=cost,
        )(x, w_full, b_sum)
    else:
        # ---------------- Fallback: K-tiled reduction ------------------------
        n_pad = _round_up(N, 128)
        tk = 128
        for cand in (_TK_CAP, 1024, 512, 256, 128):
            if cand <= _TK_CAP and n_pad % cand == 0:
                tk = cand
                break
        per_row = 2 * tk * x_item + d_pad * 4 + 2 * d_pad * o_item
        avail = _VMEM_TILE_BUDGET - 2 * tk * d_pad * w_item - 2 * d_pad * 4
        tb = max(8, min(_TB_CAP, (avail // per_row) // 8 * 8, _round_up(B, 8)))
        if B >= 16 and _round_up(B, tb) // tb < 2:
            tb = max(8, _round_up((B + 1) // 2, 8))
        b_pad = _round_up(B, tb)
        if (b_pad, n_pad) != (B, N):
            x = jnp.pad(x, ((0, b_pad - B), (0, n_pad - N)))
        if n_pad != N:
            w_full = jnp.pad(w_full, ((0, n_pad - N), (0, 0)))  # zero rows

        cost = pl.CostEstimate(
            flops=2 * b_pad * n_pad * d_pad,
            transcendentals=0,
            bytes_accessed=(b_pad * n_pad * x_item
                            + (b_pad // tb) * n_pad * d_pad * w_item
                            + b_pad * d_pad * o_item),
        )
        out = pl.pallas_call(
            _product_kernel_ktiled,
            out_shape=jax.ShapeDtypeStruct((b_pad, d_pad), out_dtype),
            grid_spec=pltpu.PrefetchScalarGridSpec(
                num_scalar_prefetch=0,
                grid=(b_pad // tb, n_pad // tk),
                in_specs=[
                    pl.BlockSpec((tb, tk), lambda i, k: (i, k)),      # x cols
                    pl.BlockSpec((tk, d_pad), lambda i, k: (k, 0)),   # fused W
                    pl.BlockSpec((1, d_pad), lambda i, k: (0, 0)),    # bias
                ],
                out_specs=pl.BlockSpec((tb, d_pad), lambda i, k: (i, 0)),
                scratch_shapes=[pltpu.VMEM((tb, d_pad), jnp.float32)],
            ),
            compiler_params=pltpu.CompilerParams(
                dimension_semantics=("parallel", "arbitrary"),
                vmem_limit_bytes=_VMEM_LIMIT,
            ),
            cost_estimate=cost,
        )(x, w_full, b_sum)

    if out.shape[0] != B or out.shape[1] != D:
        out = out[:B, :D]
    return out


if __name__ == "__main__":
    # Small shapes: batch=8, M=4 sub-models each taking n_sub=32 features,
    # each producing D=16 outputs.  Total feature dim N = 128.
    B, M, n_sub, D = 8, 4, 32, 16
    N = M * n_sub

    key = jax.random.PRNGKey(0)
    kx, kw, kb = jax.random.split(key, 3)

    x = jax.random.normal(kx, (B, N), dtype=jnp.float32)
    # Deterministic synthetic sub-model parameters (Linear(n_sub, D) each).
    weights = jax.random.normal(kw, (M, n_sub, D), dtype=jnp.float32) * 0.1
    biases = jax.random.normal(kb, (M, 1, D), dtype=jnp.float32) * 0.1

    # One-time fusion of the static sub-model parameters.
    w_full, b_sum, D_out = prepare_product_params(weights, biases)

    y = jax.block_until_ready(product_forward(x, w_full, b_sum, D_out))

    # Pure-JAX reference of Product.forward semantics (slice/apply/stack/sum).
    ys = [
        x[:, k * n_sub:(k + 1) * n_sub] @ weights[k] + biases[k, 0]
        for k in range(M)
    ]
    y_ref = jnp.sum(jnp.stack(ys, 0), 0)
    assert y.shape == (B, D)
    assert jnp.allclose(y, y_ref, atol=1e-4, rtol=1e-4)

    print("KERNEL_OK")
</pallas_src>

<mosaic_0001>
module attributes {stable_mosaic.version = 11 : i64} {
  func.func @_product_kernel_resident_w(%arg0: i32, %arg1: memref<8x128xf32, #tpu.memory_space<vmem>>, %arg2: memref<128x128xf32, #tpu.memory_space<vmem>>, %arg3: memref<1x128xf32, #tpu.memory_space<vmem>>, %arg4: memref<8x128xf32, #tpu.memory_space<vmem>>) attributes {dimension_semantics = [#tpu.dimension_semantics<parallel>], iteration_bounds = array<i64: 1>, scalar_prefetch = 0 : i64, scratch_operands = 0 : i64, tpu.core_type = #tpu.core_type<tc>, window_params = [{transform_indices = @transform_0, window_bounds = array<i64: 8, 128>}, {pipeline_mode = #tpu.pipeline_mode<synchronous>, transform_indices = @transform_1, window_bounds = array<i64: 128, 128>}, {pipeline_mode = #tpu.pipeline_mode<synchronous>, transform_indices = @transform_2, window_bounds = array<i64: 1, 128>}, {transform_indices = @transform_3, window_bounds = array<i64: 8, 128>}]} {
    %c0 = arith.constant 0 : index
    %c0_0 = arith.constant 0 : index
    %0 = vector.load %arg1[%c0, %c0_0] : memref<8x128xf32, #tpu.memory_space<vmem>>, vector<8x128xf32>
    %c0_1 = arith.constant 0 : index
    %c0_2 = arith.constant 0 : index
    %1 = vector.load %arg2[%c0_1, %c0_2] : memref<128x128xf32, #tpu.memory_space<vmem>>, vector<128x128xf32>
    %cst = arith.constant dense<0.000000e+00> : vector<8x128xf32>
    %2 = tpu.matmul %0, %1, %cst {dimension_numbers = #tpu.dot_dimension_numbers<[1], [0], [0], [1], [0, 0, 1, 1], [], []>} : vector<8x128xf32>, vector<128x128xf32>, vector<8x128xf32> -> vector<8x128xf32>
    %c0_3 = arith.constant 0 : index
    %c0_4 = arith.constant 0 : index
    %3 = vector.load %arg3[%c0_3, %c0_4] : memref<1x128xf32, #tpu.memory_space<vmem>>, vector<1x128xf32>
    %4 = vector.broadcast %3 : vector<1x128xf32> to vector<8x128xf32>
    %5 = arith.addf %2, %4 : vector<8x128xf32>
    %c0_5 = arith.constant 0 : index
    %c0_6 = arith.constant 0 : index
    %6 = vector.load %arg4[%c0_5, %c0_6] : memref<8x128xf32, #tpu.memory_space<vmem>>, vector<8x128xf32>
    tpu.vector_store %arg4[%c0_5, %c0_6], %5 {strides = array<i32>} : memref<8x128xf32, #tpu.memory_space<vmem>>, vector<8x128xf32>,
    return
  }
  func.func @transform_0(%arg0: i32) -> (i32, i32) {
    %c0_i32 = arith.constant 0 : i32
    %c0_i32_0 = arith.constant 0 : i32
    return %arg0, %c0_i32 : i32, i32
  }
  func.func @transform_1(%arg0: i32) -> (i32, i32) {
    %c0_i32 = arith.constant 0 : i32
    %c0_i32_0 = arith.constant 0 : i32
    %c0_i32_1 = arith.constant 0 : i32
    return %c0_i32, %c0_i32_0 : i32, i32
  }
  func.func @transform_2(%arg0: i32) -> (i32, i32) {
    %c0_i32 = arith.constant 0 : i32
    %c0_i32_0 = arith.constant 0 : i32
    %c0_i32_1 = arith.constant 0 : i32
    return %c0_i32, %c0_i32_0 : i32, i32
  }
  func.func @transform_3(%arg0: i32) -> (i32, i32) {
    %c0_i32 = arith.constant 0 : i32
    %c0_i32_0 = arith.constant 0 : i32
    return %arg0, %c0_i32 : i32, i32
  }
}

</mosaic_0001>

<llo_original>
// kernel: tpu_custom_call.1
$region0: #{tpu_custom_call.1}
  #allocation0 [shape = 'u32[]', space=smem, size = 0x4, offset = 0x4, fixed_abs, tag = 'smem constant byte address 0x4 - core index']
  #allocation1 [shape = 'u32[144,128]{1,0:T(1,128)}', space=vmem, size = 0x12000, scoped, tag = 'internal scratch']
  %s0 = inlined_call_operand.hbm [shape: f32[8,128], index: 0, kind: input, shape index: {}]
  %s1 = inlined_call_operand.hbm [shape: f32[128,128], index: 1, kind: input, shape index: {}]
  %s2 = inlined_call_operand.vmem [shape: f32[1,128], index: 2, kind: input, shape index: {}]
  %s3 = inlined_call_operand.hbm [shape: f32[8,128], index: 3, kind: output, shape index: {}]
  %s4 = sld [smem:[#allocation0]]
  $region30: #{tpu_custom_call.1} parent=0
    _
  %s6 = ssub.s32 1, %s4
  %s7 = scalar_select 0, %s6, %s4
  $region1: #{tpu_custom_call.1} parent=0
    #allocation2 [shape = 'u8[4096]{0}', space=vmem, size = 0x1000, scoped, tag = 'input window, operand 0, single buffered']
    #allocation3 [shape = 's32[1]{0}', space=sflag, size = 0x4, scoped, tag = 'scoped memory for tpu_custom_call.1']
    #allocation4 [shape = 's32[1]{0}', space=sflag, size = 0x4, scoped, tag = 'scoped memory for tpu_custom_call.1']
    #allocation5 [shape = 'u8[65536]{0}', space=vmem, size = 0x10000, scoped, tag = 'input window, operand 1, single buffered']
    #allocation6 [shape = 's32[1]{0}', space=sflag, size = 0x4, scoped, tag = 'scoped memory for tpu_custom_call.1']
    #allocation7 [shape = 'u8[4096]{0}', space=vmem, size = 0x1000, scoped, tag = 'output window, operand 0, single buffered']
    %8 = vsyncpa [#allocation3], 0
    %9 = vsyncpa [#allocation6], 0
    %10 = vsyncpa [#allocation4], 0
    // Predicated region
    $region2: #{tpu_custom_call.1} parent=1 // pred_check
      _
    $region3: #{tpu_custom_call.1} parent=1 // pred_check_branch
      %12 = sbr.rel (0) target = $region5
    $region4: #{tpu_custom_call.1} parent=1 // pred_region
      %s14 = ssub.s32 128, 128
      %15 = vsyncadd [#allocation3], %s14
      %s17 = sshll.u32 [#allocation2], 4
      %s18 = int_to_ptr.vmem [resolvable:$true] %s17
      %20 = dma.hbm_to_vmem [thread:$0]  %s0, 128, %s18, [#allocation3]
    $region5: #{tpu_custom_call.1} parent=1 // pred_fallthru
      _
    // Predicated region
    $region6: #{tpu_custom_call.1} parent=1 // pred_check
      _
    $region7: #{tpu_custom_call.1} parent=1 // pred_check_branch
      %22 = sbr.rel (0) target = $region9
    $region8: #{tpu_custom_call.1} parent=1 // pred_region
      %s24 = ssub.s32 2048, 2048
      %25 = vsyncadd [#allocation6], %s24
      %s26 = sshll.u32 [#allocation5], 4
      %s27 = int_to_ptr.vmem [resolvable:$true] %s26
      %32 = dma.hbm_to_vmem [thread:$0]  %s1, 2048, %s27, [#allocation6], 128, 128, 8
    $region9: #{tpu_custom_call.1} parent=1 // pred_fallthru
      _
    // Predicated region
    $region10: #{tpu_custom_call.1} parent=1 // pred_check
      _
    $region11: #{tpu_custom_call.1} parent=1 // pred_check_branch
      %34 = sbr.rel (0) target = $region13
    $region12: #{tpu_custom_call.1} parent=1 // pred_region
      _
    $region13: #{tpu_custom_call.1} parent=1 // pred_fallthru
      _
    // Predicated region
    $region14: #{tpu_custom_call.1} parent=1 // pred_check
      _
    $region15: #{tpu_custom_call.1} parent=1 // pred_check_branch
      %36 = sbr.rel (0) target = $region17
    $region16: #{tpu_custom_call.1} parent=1 // pred_region
      %37 = dma.done [#allocation3], 128
    $region17: #{tpu_custom_call.1} parent=1 // pred_fallthru
      _
    // Predicated region
    $region18: #{tpu_custom_call.1} parent=1 // pred_check
      _
    $region19: #{tpu_custom_call.1} parent=1 // pred_check_branch
      %39 = sbr.rel (0) target = $region21
    $region20: #{tpu_custom_call.1} parent=1 // pred_region
      %40 = dma.done [#allocation6], 2048
    $region21: #{tpu_custom_call.1} parent=1 // pred_fallthru
      _
    %v41 = vld [vmem:[#allocation2] sm:$0xff]
    %v42 = vld [vmem:[#allocation5] sm:$0xff]
    %v43 = vld [vmem:[#allocation5 + $0x8] sm:$0xff]
    %v44 = vld [vmem:[#allocation5 + $0x10] sm:$0xff]
    %v45 = vld [vmem:[#allocation5 + $0x18] sm:$0xff]
    %v46 = vld [vmem:[#allocation5 + $0x20] sm:$0xff]
    %v47 = vld [vmem:[#allocation5 + $0x28] sm:$0xff]
    %v48 = vld [vmem:[#allocation5 + $0x30] sm:$0xff]
    %v49 = vld [vmem:[#allocation5 + $0x38] sm:$0xff]
    %v50 = vld [vmem:[#allocation5 + $0x40] sm:$0xff]
    %v51 = vld [vmem:[#allocation5 + $0x48] sm:$0xff]
    %v52 = vld [vmem:[#allocation5 + $0x50] sm:$0xff]
    %v53 = vld [vmem:[#allocation5 + $0x58] sm:$0xff]
    %v54 = vld [vmem:[#allocation5 + $0x60] sm:$0xff]
    %v55 = vld [vmem:[#allocation5 + $0x68] sm:$0xff]
    %v56 = vld [vmem:[#allocation5 + $0x70] sm:$0xff]
    %v57 = vld [vmem:[#allocation5 + $0x78] sm:$0xff]
    %v58 = vld [vmem:[%s2] sm:$0x1]
    %v60 = vlaneseq
    %v61 = vshrl.u32 %v60, 7
    %v62 = vsub.s32 0, %v61
    %v63 = vrot.slane %v58, %v62
    %65 = vmatprep.subr.mxu0 0.0
    %66 = vmatpush1.msra.mxu0 %v57
    %67 = vmatprep.subr.mxu0 0.0
    %68 = vmatpush1.msra.mxu0 %v56
    %69 = vmatprep.subr.mxu0 0.0
    %70 = vmatpush1.msra.mxu0 %v55
    %71 = vmatprep.subr.mxu0 0.0
    %72 = vmatpush1.msra.mxu0 %v54
    %73 = vmatprep.subr.mxu0 0.0
    %74 = vmatpush1.msra.mxu0 %v53
    %75 = vmatprep.subr.mxu0 0.0
    %76 = vmatpush1.msra.mxu0 %v52
    %77 = vmatprep.subr.mxu0 0.0
    %78 = vmatpush1.msra.mxu0 %v51
    %79 = vmatprep.subr.mxu0 0.0
    %80 = vmatpush1.msra.mxu0 %v50
    %81 = vmatprep.subr.mxu0 0.0
    %82 = vmatpush1.msra.mxu0 %v49
    %83 = vmatprep.subr.mxu0 0.0
    %84 = vmatpush1.msra.mxu0 %v48
    %85 = vmatprep.subr.mxu0 0.0
    %86 = vmatpush1.msra.mxu0 %v47
    %87 = vmatprep.subr.mxu0 0.0
    %88 = vmatpush1.msra.mxu0 %v46
    %89 = vmatprep.subr.mxu0 0.0
    %90 = vmatpush1.msra.mxu0 %v45
    %91 = vmatprep.subr.mxu0 0.0
    %92 = vmatpush1.msra.mxu0 %v44
    %93 = vmatprep.subr.mxu0 0.0
    %94 = vmatpush1.msra.mxu0 %v43
    %95 = vmatprep.subr.mxu0 0.0
    %96 = vmatpush1.msra.mxu0 %v42
    %97 = vmatprep.subr.mxu0 0.0
    %98 = vmatpush2.msra.mxu0 0.0
    %99 = vmatprep.subr.mxu0 0.0
    %100 = vmatpush2.msra.mxu0 0.0
    %101 = vmatprep.subr.mxu0 0.0
    %102 = vmatpush2.msra.mxu0 0.0
    %103 = vmatprep.subr.mxu0 0.0
    %104 = vmatpush2.msra.mxu0 0.0
    %105 = vmatprep.subr.mxu0 0.0
    %106 = vmatpush2.msra.mxu0 0.0
    %107 = vmatprep.subr.mxu0 0.0
    %108 = vmatpush2.msra.mxu0 0.0
    %109 = vmatprep.subr.mxu0 0.0
    %110 = vmatpush2.msra.mxu0 0.0
    %111 = vmatprep.subr.mxu0 0.0
    %112 = vmatpush2.msra.mxu0 0.0
    %113 = vmatprep.subr.mxu0 0.0
    %114 = vmatpush2.msra.mxu0 0.0
    %115 = vmatprep.subr.mxu0 0.0
    %116 = vmatpush2.msra.mxu0 0.0
    %117 = vmatprep.subr.mxu0 0.0
    %118 = vmatpush2.msra.mxu0 0.0
    %119 = vmatprep.subr.mxu0 0.0
    %120 = vmatpush2.msra.mxu0 0.0
    %121 = vmatprep.subr.mxu0 0.0
    %122 = vmatpush2.msra.mxu0 0.0
    %123 = vmatprep.subr.mxu0 0.0
    %124 = vmatpush2.msra.mxu0 0.0
    %125 = vmatprep.subr.mxu0 0.0
    %126 = vmatpush2.msra.mxu0 0.0
    %127 = vmatprep.subr.mxu0 0.0
    %128 = vmatpush2.msra.mxu0 0.0
    %129 = vmatprep.mubr.f32.mxu0 0.0
    %130 = vmatmul.mubr.f32.gmra.mxu0 %v41
    %v131 = vpop.f32.mrf.mxu0
    %v132 = vadd.f32 %v63, %v131
    %v133 = vpop.f32.mrf.mxu0
    %134 = vdwg.mxu0
    %135 = vst [vmem:[#allocation7] sm:$0xff] %v132
    // Predicated region
    $region22: #{tpu_custom_call.1} parent=1 // pred_check
      _
    $region23: #{tpu_custom_call.1} parent=1 // pred_check_branch
      %137 = sbr.rel (0) target = $region25
    $region24: #{tpu_custom_call.1} parent=1 // pred_region
      %s139 = ssub.s32 128, 128
      %140 = vsyncadd [#allocation4], %s139
      %s142 = sshll.u32 [#allocation7], 4
      %s143 = int_to_ptr.vmem [resolvable:$true] %s142
      %145 = dma.vmem_to_hbm [thread:$0]  %s143, 128, %s3, [#allocation4]
    $region25: #{tpu_custom_call.1} parent=1 // pred_fallthru
      _
    // Predicated region
    $region26: #{tpu_custom_call.1} parent=1 // pred_check
      _
    $region27: #{tpu_custom_call.1} parent=1 // pred_check_branch
      %147 = sbr.rel (0) target = $region29
    $region28: #{tpu_custom_call.1} parent=1 // pred_region
      %148 = dma.done [#allocation4], 128
    $region29: #{tpu_custom_call.1} parent=1 // pred_fallthru
      _
    %149 = vsyncpa [#allocation3], 1
    %150 = vsyncpa [#allocation6], 1
    %151 = vsyncpa [#allocation4], 1

</llo_original>
